<compile_context>
chip_gen: v7x
topology: tpu7x:2x2x1
jax: 0.10.0
libtpu: 0.0.40
codegen_flags: <defaults>
</compile_context>

<pallas_src>
import functools

import jax
import jax.numpy as jnp
from jax.experimental import pallas as pl
from jax.experimental.pallas import tpu as pltpu


_ACTIVATIONS = {
    "relu": lambda x: jnp.maximum(x, 0.0),
    "identity": lambda x: x,
    "tanh": jnp.tanh,
    "sigmoid": jax.nn.sigmoid,
}

_LANE = 128       # vreg lane width
_ROW_ALIGN = 16   # bf16 packs 2 rows/sublane -> keep batch tiles 16-aligned


def _round_up(n, m):
    return ((n + m - 1) // m) * m


def _default_batch_tile():
    """512-row tiles on 128 MiB-VMEM chips (v5e/v6e), 256 on v7x (64 MiB/TC)."""
    try:
        vmem = pltpu.get_tpu_info().vmem_capacity_bytes
        return 512 if vmem >= (96 << 20) else 256
    except Exception:
        return 256


def _make_mlp_kernel(num_layers, activation, true_out_dim, padded_out_dim):
    act_fn = _ACTIVATIONS[activation]

    def kernel(*refs):
        # refs layout: x_ref, (w_ref, b_ref) * num_layers, o_ref
        x_ref = refs[0]
        o_ref = refs[-1]
        params = refs[1:-1]

        x = x_ref[...]                                    # (TB, in_pad) bf16
        for i in range(num_layers):
            w = params[2 * i][...]                        # (in_pad, out_pad) bf16
            b = params[2 * i + 1][...]                    # (1, out_pad) f32
            y = jnp.dot(x, w, preferred_element_type=jnp.float32) + b
            h = act_fn(y)                                 # f32
            if i + 1 < num_layers:
                x = h.astype(jnp.bfloat16)                # next layer's MXU LHS
            else:
                x = h                                     # keep f32 for softmax

        # Mask the zero-padded output lanes so they don't perturb the softmax.
        if padded_out_dim > true_out_dim:
            lane = jax.lax.broadcasted_iota(jnp.int32, x.shape, 1)
            x = jnp.where(lane < true_out_dim, x, -jnp.inf)

        # Numerically stable softmax along dim=1 (feature axis).
        m = jnp.max(x, axis=1, keepdims=True)
        e = jnp.exp(x - m)
        denom = jnp.sum(e, axis=1, keepdims=True)
        o_ref[...] = (e * pl.reciprocal(denom, approx=True)).astype(o_ref.dtype)

    return kernel


def prepare_params(weights, biases):
    """One-time padding / bf16 casting of layer params (hoisted out of the
    per-call path).  Weights are stored (in, out), i.e. torch weight.T."""
    assert len(weights) == len(biases)
    num_layers = len(weights)
    dims = [weights[0].shape[0]] + [w.shape[1] for w in weights]
    pdims = [_round_up(d, _LANE) for d in dims]

    flat = []
    for li, (w, b) in enumerate(zip(weights, biases)):
        ip, op = pdims[li], pdims[li + 1]
        wp = jnp.zeros((ip, op), jnp.bfloat16)
        wp = wp.at[: w.shape[0], : w.shape[1]].set(w.astype(jnp.bfloat16))
        bp = jnp.zeros((1, op), jnp.float32)
        bp = bp.at[0, : b.shape[0]].set(b.astype(jnp.float32))
        flat += [wp, bp]

    return {
        "flat": tuple(jax.device_put(p) for p in flat),
        "dims": tuple(dims),
        "pdims": tuple(pdims),
        "num_layers": num_layers,
    }


def mlp_forward(x, params, activation="relu", batch_tile=None):
    """Fused MLP forward + softmax in one Pallas call.

    x:      (batch, Sl[0]) array
    params: output of prepare_params()
    """
    num_layers = params["num_layers"]
    dims, pdims = params["dims"], params["pdims"]
    flat_params = params["flat"]
    batch, in_dim = x.shape
    assert in_dim == dims[0]
    out_dim, out_pad = dims[-1], pdims[-1]

    if batch_tile is None:
        batch_tile = _default_batch_tile()

    # Batch tile: lane-dense bf16 rows (multiple of 16), capped at batch_tile.
    tb = min(_round_up(batch, _ROW_ALIGN), _round_up(batch_tile, _ROW_ALIGN))
    # Prefer >=2 grid steps so v7x can shard across its two TensorCores.
    if _round_up(batch, tb) // tb < 2 and batch > 2 * _ROW_ALIGN:
        tb = _round_up(pl.cdiv(batch, 2), _ROW_ALIGN)
    batch_pad = _round_up(batch, tb)
    grid = (batch_pad // tb,)

    # Zero-pad input to (batch_pad, in_pad) in bf16 (halves the per-step DMA).
    xp = jnp.zeros((batch_pad, pdims[0]), jnp.bfloat16)
    xp = xp.at[:batch, :in_dim].set(x.astype(jnp.bfloat16))

    kernel = _make_mlp_kernel(num_layers, activation, out_dim, out_pad)

    # VMEM budget: double-buffered x/out tiles + resident params (assume 2x
    # for the non-Buffered(1) fallback) + headroom.
    param_bytes = sum(p.size * p.dtype.itemsize for p in flat_params)
    tile_bytes = 2 * (tb * pdims[0] * 2) + 2 * (tb * out_pad * 2)
    footprint = tile_bytes + 2 * param_bytes
    vmem_limit = min(max(2 * footprint + (4 << 20), 32 << 20), 64 << 20)

    cost = pl.CostEstimate(
        flops=2 * batch_pad * sum(pdims[i] * pdims[i + 1] for i in range(num_layers)),
        transcendentals=batch_pad * out_pad + batch_pad,      # exp + reciprocal
        bytes_accessed=(xp.size * xp.dtype.itemsize + param_bytes
                        + batch_pad * out_pad * 2),
    )

    def _build_in_specs(single_buffer_params):
        specs = [pl.BlockSpec((tb, pdims[0]), lambda i: (i, 0))]
        for li in range(num_layers):
            ip, op = pdims[li], pdims[li + 1]
            kw = {}
            if single_buffer_params:
                kw["pipeline_mode"] = pl.Buffered(1)
            # Constant index_map -> params stay VMEM-resident across steps.
            specs.append(pl.BlockSpec((ip, op), lambda i: (0, 0), **kw))
            specs.append(pl.BlockSpec((1, op), lambda i: (0, 0), **kw))
        return specs

    def _run(single_buffer_params):
        return pl.pallas_call(
            kernel,
            out_shape=jax.ShapeDtypeStruct((batch_pad, out_pad), jnp.bfloat16),
            grid=grid,
            in_specs=_build_in_specs(single_buffer_params),
            out_specs=pl.BlockSpec((tb, out_pad), lambda i: (i, 0)),
            compiler_params=pltpu.CompilerParams(
                dimension_semantics=("parallel",),
                vmem_limit_bytes=int(vmem_limit),
            ),
            cost_estimate=cost,
        )(xp, *flat_params)

    try:
        out_padded = _run(True)           # single-buffered resident params
    except Exception:
        out_padded = _run(False)          # fallback: default double buffering

    return out_padded[:batch, :out_dim].astype(jnp.float32)


def _reference_forward(x, weights, biases, activation):
    act_fn = _ACTIVATIONS[activation]
    h = x.astype(jnp.float32)
    for w, b in zip(weights, biases):
        h = act_fn(h @ w.astype(jnp.float32) + b.astype(jnp.float32))
    return jax.nn.softmax(h, axis=1)


def init_params(key, Sl):
    """Deterministic init mirroring nn.Linear shapes (weights stored as (in, out))."""
    weights, biases = [], []
    for i in range(len(Sl) - 1):
        key, kw, kb = jax.random.split(key, 3)
        bound = 1.0 / jnp.sqrt(Sl[i])
        w = jax.random.uniform(kw, (Sl[i], Sl[i + 1]), jnp.float32, -bound, bound)
        b = jax.random.uniform(kb, (Sl[i + 1],), jnp.float32, -bound, bound)
        weights.append(w)
        biases.append(b)
    return weights, biases


if __name__ == "__main__":
    key = jax.random.PRNGKey(0)

    configs = [
        # (Sl, activation) — n=3 (fc1, fc2) and n=4 (fc1..fc3) variants.
        ([32, 64, 16], "relu"),
        ([32, 64, 16], "sigmoid"),
        ([32, 48, 24, 16], "tanh"),
    ]
    batch = 8

    for Sl, activation in configs:
        key, kx, kp = jax.random.split(key, 3)
        x = jax.random.normal(kx, (batch, Sl[0]), jnp.float32)
        weights, biases = init_params(kp, Sl)

        prepared = prepare_params(weights, biases)   # hoisted: done once
        out = mlp_forward(x, prepared, activation=activation)
        out = jax.block_until_ready(out)
        ref = _reference_forward(x, weights, biases, activation)

        assert out.shape == (batch, Sl[-1])
        # bf16 MXU path + approx reciprocal + bf16 output -> relaxed tolerance.
        assert jnp.allclose(out, ref, atol=2.5e-2, rtol=2.5e-2), (
            f"mismatch vs JAX reference ({activation}, Sl={Sl})")
        assert jnp.allclose(jnp.sum(out, axis=1), 1.0, atol=2e-2), (
            "softmax rows must sum to ~1")

    print("KERNEL_OK")
</pallas_src>

<mosaic_0001>
module attributes {stable_mosaic.version = 11 : i64} {
  func.func @kernel(%arg0: i32, %arg1: memref<16x128xbf16, #tpu.memory_space<vmem>>, %arg2: memref<128x128xbf16, #tpu.memory_space<vmem>>, %arg3: memref<1x128xf32, #tpu.memory_space<vmem>>, %arg4: memref<128x128xbf16, #tpu.memory_space<vmem>>, %arg5: memref<1x128xf32, #tpu.memory_space<vmem>>, %arg6: memref<16x128xbf16, #tpu.memory_space<vmem>>) attributes {dimension_semantics = [#tpu.dimension_semantics<parallel>], iteration_bounds = array<i64: 1>, scalar_prefetch = 0 : i64, scratch_operands = 0 : i64, tpu.core_type = #tpu.core_type<tc>, window_params = [{transform_indices = @transform_0, window_bounds = array<i64: 16, 128>}, {pipeline_mode = #tpu.pipeline_mode<synchronous>, transform_indices = @transform_1, window_bounds = array<i64: 128, 128>}, {pipeline_mode = #tpu.pipeline_mode<synchronous>, transform_indices = @transform_2, window_bounds = array<i64: 1, 128>}, {pipeline_mode = #tpu.pipeline_mode<synchronous>, transform_indices = @transform_3, window_bounds = array<i64: 128, 128>}, {pipeline_mode = #tpu.pipeline_mode<synchronous>, transform_indices = @transform_4, window_bounds = array<i64: 1, 128>}, {transform_indices = @transform_5, window_bounds = array<i64: 16, 128>}]} {
    %c0 = arith.constant 0 : index
    %c0_0 = arith.constant 0 : index
    %0 = vector.load %arg1[%c0, %c0_0] : memref<16x128xbf16, #tpu.memory_space<vmem>>, vector<16x128xbf16>
    %c0_1 = arith.constant 0 : index
    %c0_2 = arith.constant 0 : index
    %1 = vector.load %arg2[%c0_1, %c0_2] : memref<128x128xbf16, #tpu.memory_space<vmem>>, vector<128x128xbf16>
    %c0_3 = arith.constant 0 : index
    %c0_4 = arith.constant 0 : index
    %2 = vector.load %arg3[%c0_3, %c0_4] : memref<1x128xf32, #tpu.memory_space<vmem>>, vector<1x128xf32>
    %cst = arith.constant dense<0.000000e+00> : vector<16x128xf32>
    %3 = tpu.matmul %0, %1, %cst {dimension_numbers = #tpu.dot_dimension_numbers<[1], [0], [0], [1], [0, 0, 1, 1], [], []>} : vector<16x128xbf16>, vector<128x128xbf16>, vector<16x128xf32> -> vector<16x128xf32>
    %4 = vector.broadcast %2 : vector<1x128xf32> to vector<16x128xf32>
    %5 = arith.addf %3, %4 : vector<16x128xf32>
    %cst_5 = arith.constant 0.000000e+00 : f32
    %6 = vector.broadcast %cst_5 : f32 to vector<16x128xf32>
    %7 = arith.maximumf %5, %6 : vector<16x128xf32>
    %8 = arith.truncf %7 : vector<16x128xf32> to vector<16x128xbf16>
    %c0_6 = arith.constant 0 : index
    %c0_7 = arith.constant 0 : index
    %9 = vector.load %arg4[%c0_6, %c0_7] : memref<128x128xbf16, #tpu.memory_space<vmem>>, vector<128x128xbf16>
    %c0_8 = arith.constant 0 : index
    %c0_9 = arith.constant 0 : index
    %10 = vector.load %arg5[%c0_8, %c0_9] : memref<1x128xf32, #tpu.memory_space<vmem>>, vector<1x128xf32>
    %cst_10 = arith.constant dense<0.000000e+00> : vector<16x128xf32>
    %11 = tpu.matmul %8, %9, %cst_10 {dimension_numbers = #tpu.dot_dimension_numbers<[1], [0], [0], [1], [0, 0, 1, 1], [], []>} : vector<16x128xbf16>, vector<128x128xbf16>, vector<16x128xf32> -> vector<16x128xf32>
    %12 = vector.broadcast %10 : vector<1x128xf32> to vector<16x128xf32>
    %13 = arith.addf %11, %12 : vector<16x128xf32>
    %cst_11 = arith.constant 0.000000e+00 : f32
    %14 = vector.broadcast %cst_11 : f32 to vector<16x128xf32>
    %15 = arith.maximumf %13, %14 : vector<16x128xf32>
    %16 = tpu.iota {dimensions = array<i32: 1>} : vector<16x128xi32>
    %c16_i32 = arith.constant 16 : i32
    %17 = vector.broadcast %c16_i32 : i32 to vector<16x128xi32>
    %18 = arith.cmpi slt, %16, %17 : vector<16x128xi32>
    %cst_12 = arith.constant 0xFF800000 : f32
    %19 = vector.broadcast %cst_12 : f32 to vector<16x128xf32>
    %20 = arith.select %18, %15, %19 : vector<16x128xi1>, vector<16x128xf32>
    %cst_13 = arith.constant dense<0xFF800000> : vector<16xf32>
    %21 = vector.multi_reduction <maximumf>, %20, %cst_13 [1] : vector<16x128xf32> to vector<16xf32>
    %22 = vector.shape_cast %21 : vector<16xf32> to vector<16x1xf32>
    %23 = vector.broadcast %22 : vector<16x1xf32> to vector<16x128xf32>
    %24 = arith.subf %20, %23 : vector<16x128xf32>
    %25 = math.exp %24 : vector<16x128xf32>
    %cst_14 = arith.constant dense<0.000000e+00> : vector<16xf32>
    %26 = vector.multi_reduction <add>, %25, %cst_14 [1] : vector<16x128xf32> to vector<16xf32>
    %27 = vector.shape_cast %26 : vector<16xf32> to vector<16x1xf32>
    %28 = tpu.reciprocal %27 {approx = true} : vector<16x1xf32> -> vector<16x1xf32>
    %29 = vector.broadcast %28 : vector<16x1xf32> to vector<16x128xf32>
    %30 = arith.mulf %25, %29 : vector<16x128xf32>
    %31 = arith.truncf %30 : vector<16x128xf32> to vector<16x128xbf16>
    %c0_15 = arith.constant 0 : index
    %c0_16 = arith.constant 0 : index
    %32 = vector.load %arg6[%c0_15, %c0_16] : memref<16x128xbf16, #tpu.memory_space<vmem>>, vector<16x128xbf16>
    tpu.vector_store %arg6[%c0_15, %c0_16], %31 {strides = array<i32>} : memref<16x128xbf16, #tpu.memory_space<vmem>>, vector<16x128xbf16>,
    return
  }
  func.func @transform_0(%arg0: i32) -> (i32, i32) {
    %c0_i32 = arith.constant 0 : i32
    %c0_i32_0 = arith.constant 0 : i32
    return %arg0, %c0_i32 : i32, i32
  }
  func.func @transform_1(%arg0: i32) -> (i32, i32) {
    %c0_i32 = arith.constant 0 : i32
    %c0_i32_0 = arith.constant 0 : i32
    %c0_i32_1 = arith.constant 0 : i32
    return %c0_i32, %c0_i32_0 : i32, i32
  }
  func.func @transform_2(%arg0: i32) -> (i32, i32) {
    %c0_i32 = arith.constant 0 : i32
    %c0_i32_0 = arith.constant 0 : i32
    %c0_i32_1 = arith.constant 0 : i32
    return %c0_i32, %c0_i32_0 : i32, i32
  }
  func.func @transform_3(%arg0: i32) -> (i32, i32) {
    %c0_i32 = arith.constant 0 : i32
    %c0_i32_0 = arith.constant 0 : i32
    %c0_i32_1 = arith.constant 0 : i32
    return %c0_i32, %c0_i32_0 : i32, i32
  }
  func.func @transform_4(%arg0: i32) -> (i32, i32) {
    %c0_i32 = arith.constant 0 : i32
    %c0_i32_0 = arith.constant 0 : i32
    %c0_i32_1 = arith.constant 0 : i32
    return %c0_i32, %c0_i32_0 : i32, i32
  }
  func.func @transform_5(%arg0: i32) -> (i32, i32) {
    %c0_i32 = arith.constant 0 : i32
    %c0_i32_0 = arith.constant 0 : i32
    return %arg0, %c0_i32 : i32, i32
  }
}

module attributes {stable_mosaic.version = 11 : i64} {
  func.func @kernel(%arg0: i32, %arg1: memref<16x128xbf16, #tpu.memory_space<vmem>>, %arg2: memref<128x128xbf16, #tpu.memory_space<vmem>>, %arg3: memref<1x128xf32, #tpu.memory_space<vmem>>, %arg4: memref<128x128xbf16, #tpu.memory_space<vmem>>, %arg5: memref<1x128xf32, #tpu.memory_space<vmem>>, %arg6: memref<16x128xbf16, #tpu.memory_space<vmem>>) attributes {dimension_semantics = [#tpu.dimension_semantics<parallel>], iteration_bounds = array<i64: 1>, scalar_prefetch = 0 : i64, scratch_operands = 0 : i64, tpu.core_type = #tpu.core_type<tc>, window_params = [{transform_indices = @transform_0, window_bounds = array<i64: 16, 128>}, {pipeline_mode = #tpu.pipeline_mode<synchronous>, transform_indices = @transform_1, window_bounds = array<i64: 128, 128>}, {pipeline_mode = #tpu.pipeline_mode<synchronous>, transform_indices = @transform_2, window_bounds = array<i64: 1, 128>}, {pipeline_mode = #tpu.pipeline_mode<synchronous>, transform_indices = @transform_3, window_bounds = array<i64: 128, 128>}, {pipeline_mode = #tpu.pipeline_mode<synchronous>, transform_indices = @transform_4, window_bounds = array<i64: 1, 128>}, {transform_indices = @transform_5, window_bounds = array<i64: 16, 128>}]} {
    %c0 = arith.constant 0 : index
    %c0_0 = arith.constant 0 : index
    %0 = vector.load %arg1[%c0, %c0_0] : memref<16x128xbf16, #tpu.memory_space<vmem>>, vector<16x128xbf16>
    %c0_1 = arith.constant 0 : index
    %c0_2 = arith.constant 0 : index
    %1 = vector.load %arg2[%c0_1, %c0_2] : memref<128x128xbf16, #tpu.memory_space<vmem>>, vector<128x128xbf16>
    %c0_3 = arith.constant 0 : index
    %c0_4 = arith.constant 0 : index
    %2 = vector.load %arg3[%c0_3, %c0_4] : memref<1x128xf32, #tpu.memory_space<vmem>>, vector<1x128xf32>
    %cst = arith.constant dense<0.000000e+00> : vector<16x128xf32>
    %3 = tpu.matmul %0, %1, %cst {dimension_numbers = #tpu.dot_dimension_numbers<[1], [0], [0], [1], [0, 0, 1, 1], [], []>} : vector<16x128xbf16>, vector<128x128xbf16>, vector<16x128xf32> -> vector<16x128xf32>
    %4 = vector.broadcast %2 : vector<1x128xf32> to vector<16x128xf32>
    %5 = arith.addf %3, %4 : vector<16x128xf32>
    %cst_5 = arith.constant 0.000000e+00 : f32
    %6 = vector.broadcast %cst_5 : f32 to vector<16x128xf32>
    %7 = arith.maximumf %5, %6 : vector<16x128xf32>
    %8 = arith.truncf %7 : vector<16x128xf32> to vector<16x128xbf16>
    %c0_6 = arith.constant 0 : index
    %c0_7 = arith.constant 0 : index
    %9 = vector.load %arg4[%c0_6, %c0_7] : memref<128x128xbf16, #tpu.memory_space<vmem>>, vector<128x128xbf16>
    %c0_8 = arith.constant 0 : index
    %c0_9 = arith.constant 0 : index
    %10 = vector.load %arg5[%c0_8, %c0_9] : memref<1x128xf32, #tpu.memory_space<vmem>>, vector<1x128xf32>
    %cst_10 = arith.constant dense<0.000000e+00> : vector<16x128xf32>
    %11 = tpu.matmul %8, %9, %cst_10 {dimension_numbers = #tpu.dot_dimension_numbers<[1], [0], [0], [1], [0, 0, 1, 1], [], []>} : vector<16x128xbf16>, vector<128x128xbf16>, vector<16x128xf32> -> vector<16x128xf32>
    %12 = vector.broadcast %10 : vector<1x128xf32> to vector<16x128xf32>
    %13 = arith.addf %11, %12 : vector<16x128xf32>
    %cst_11 = arith.constant 0.000000e+00 : f32
    %14 = vector.broadcast %cst_11 : f32 to vector<16x128xf32>
    %15 = arith.maximumf %13, %14 : vector<16x128xf32>
    %16 = tpu.iota {dimensions = array<i32: 1>} : vector<16x128xi32>
    %c16_i32 = arith.constant 16 : i32
    %17 = vector.broadcast %c16_i32 : i32 to vector<16x128xi32>
    %18 = arith.cmpi slt, %16, %17 : vector<16x128xi32>
    %cst_12 = arith.constant 0xFF800000 : f32
    %19 = vector.broadcast %cst_12 : f32 to vector<16x128xf32>
    %20 = arith.select %18, %15, %19 : vector<16x128xi1>, vector<16x128xf32>
    %cst_13 = arith.constant dense<0xFF800000> : vector<16xf32>
    %21 = vector.multi_reduction <maximumf>, %20, %cst_13 [1] : vector<16x128xf32> to vector<16xf32>
    %22 = vector.shape_cast %21 : vector<16xf32> to vector<16x1xf32>
    %23 = vector.broadcast %22 : vector<16x1xf32> to vector<16x128xf32>
    %24 = arith.subf %20, %23 : vector<16x128xf32>
    %25 = math.exp %24 : vector<16x128xf32>
    %cst_14 = arith.constant dense<0.000000e+00> : vector<16xf32>
    %26 = vector.multi_reduction <add>, %25, %cst_14 [1] : vector<16x128xf32> to vector<16xf32>
    %27 = vector.shape_cast %26 : vector<16xf32> to vector<16x1xf32>
    %28 = tpu.reciprocal %27 {approx = true} : vector<16x1xf32> -> vector<16x1xf32>
    %29 = vector.broadcast %28 : vector<16x1xf32> to vector<16x128xf32>
    %30 = arith.mulf %25, %29 : vector<16x128xf32>
    %31 = arith.truncf %30 : vector<16x128xf32> to vector<16x128xbf16>
    %c0_15 = arith.constant 0 : index
    %c0_16 = arith.constant 0 : index
    %32 = vector.load %arg6[%c0_15, %c0_16] : memref<16x128xbf16, #tpu.memory_space<vmem>>, vector<16x128xbf16>
    tpu.vector_store %arg6[%c0_15, %c0_16], %31 {strides = array<i32>} : memref<16x128xbf16, #tpu.memory_space<vmem>>, vector<16x128xbf16>,
    return
  }
  func.func @transform_0(%arg0: i32) -> (i32, i32) {
    %c0_i32 = arith.constant 0 : i32
    %c0_i32_0 = arith.constant 0 : i32
    return %arg0, %c0_i32 : i32, i32
  }
  func.func @transform_1(%arg0: i32) -> (i32, i32) {
    %c0_i32 = arith.constant 0 : i32
    %c0_i32_0 = arith.constant 0 : i32
    %c0_i32_1 = arith.constant 0 : i32
    return %c0_i32, %c0_i32_0 : i32, i32
  }
  func.func @transform_2(%arg0: i32) -> (i32, i32) {
    %c0_i32 = arith.constant 0 : i32
    %c0_i32_0 = arith.constant 0 : i32
    %c0_i32_1 = arith.constant 0 : i32
    return %c0_i32, %c0_i32_0 : i32, i32
  }
  func.func @transform_3(%arg0: i32) -> (i32, i32) {
    %c0_i32 = arith.constant 0 : i32
    %c0_i32_0 = arith.constant 0 : i32
    %c0_i32_1 = arith.constant 0 : i32
    return %c0_i32, %c0_i32_0 : i32, i32
  }
  func.func @transform_4(%arg0: i32) -> (i32, i32) {
    %c0_i32 = arith.constant 0 : i32
    %c0_i32_0 = arith.constant 0 : i32
    %c0_i32_1 = arith.constant 0 : i32
    return %c0_i32, %c0_i32_0 : i32, i32
  }
  func.func @transform_5(%arg0: i32) -> (i32, i32) {
    %c0_i32 = arith.constant 0 : i32
    %c0_i32_0 = arith.constant 0 : i32
    return %arg0, %c0_i32 : i32, i32
  }
}

</mosaic_0001>

<llo_original>
// kernel: tpu_custom_call.1
$region0: #{tpu_custom_call.1}
  #allocation0 [shape = 'u32[]', space=smem, size = 0x4, offset = 0x4, fixed_abs, tag = 'smem constant byte address 0x4 - core index']
  #allocation1 [shape = 'u32[144,128]{1,0:T(1,128)}', space=vmem, size = 0x12000, scoped, tag = 'internal scratch']
  %s0 = inlined_call_operand.hbm [shape: bf16[16,128], index: 0, kind: input, shape index: {}]
  %s1 = inlined_call_operand.hbm [shape: bf16[128,128], index: 1, kind: input, shape index: {}]
  %s2 = inlined_call_operand.vmem [shape: f32[1,128], index: 2, kind: input, shape index: {}]
  %s3 = inlined_call_operand.hbm [shape: bf16[128,128], index: 3, kind: input, shape index: {}]
  %s4 = inlined_call_operand.vmem [shape: f32[1,128], index: 4, kind: input, shape index: {}]
  %s5 = inlined_call_operand.hbm [shape: bf16[16,128], index: 5, kind: output, shape index: {}]
  %s6 = sld [smem:[#allocation0]]
  $region42: #{tpu_custom_call.1} parent=0
    _
  %s8 = ssub.s32 1, %s6
  %s9 = scalar_select 0, %s8, %s6
  $region1: #{tpu_custom_call.1} parent=0
    #allocation2 [shape = 'u8[4096]{0}', space=vmem, size = 0x1000, scoped, tag = 'input window, operand 0, single buffered']
    #allocation3 [shape = 's32[1]{0}', space=sflag, size = 0x4, scoped, tag = 'scoped memory for tpu_custom_call.1']
    #allocation4 [shape = 's32[1]{0}', space=sflag, size = 0x4, scoped, tag = 'scoped memory for tpu_custom_call.1']
    #allocation5 [shape = 'u8[32768]{0}', space=vmem, size = 0x8000, scoped, tag = 'input window, operand 1, single buffered']
    #allocation6 [shape = 's32[1]{0}', space=sflag, size = 0x4, scoped, tag = 'scoped memory for tpu_custom_call.1']
    #allocation7 [shape = 'u8[32768]{0}', space=vmem, size = 0x8000, scoped, tag = 'input window, operand 3, single buffered']
    #allocation8 [shape = 'u8[4096]{0}', space=vmem, size = 0x1000, scoped, tag = 'output window, operand 0, single buffered']
    %10 = vsyncpa [#allocation3], 0
    %11 = vsyncpa [#allocation6], 0
    %12 = vsyncpa [#allocation4], 0
    // Predicated region
    $region2: #{tpu_custom_call.1} parent=1 // pred_check
      _
    $region3: #{tpu_custom_call.1} parent=1 // pred_check_branch
      %14 = sbr.rel (0) target = $region5
    $region4: #{tpu_custom_call.1} parent=1 // pred_region
      %s16 = ssub.s32 128, 128
      %17 = vsyncadd [#allocation3], %s16
      %s18 = sshll.u32 [#allocation2], 4
      %s19 = int_to_ptr.vmem [resolvable:$true] %s18
      %24 = dma.hbm_to_vmem [thread:$0]  %s0, 128, %s19, [#allocation3], 64, 64, 4
    $region5: #{tpu_custom_call.1} parent=1 // pred_fallthru
      _
    // Predicated region
    $region6: #{tpu_custom_call.1} parent=1 // pred_check
      _
    $region7: #{tpu_custom_call.1} parent=1 // pred_check_branch
      %26 = sbr.rel (0) target = $region9
    $region8: #{tpu_custom_call.1} parent=1 // pred_region
      %s28 = ssub.s32 1024, 1024
      %29 = vsyncadd [#allocation6], %s28
      %s30 = sshll.u32 [#allocation5], 4
      %s31 = int_to_ptr.vmem [resolvable:$true] %s30
      %36 = dma.hbm_to_vmem [thread:$0]  %s1, 1024, %s31, [#allocation6], 64, 64, 4
    $region9: #{tpu_custom_call.1} parent=1 // pred_fallthru
      _
    // Predicated region
    $region10: #{tpu_custom_call.1} parent=1 // pred_check
      _
    $region11: #{tpu_custom_call.1} parent=1 // pred_check_branch
      %38 = sbr.rel (0) target = $region13
    $region12: #{tpu_custom_call.1} parent=1 // pred_region
      _
    $region13: #{tpu_custom_call.1} parent=1 // pred_fallthru
      _
    // Predicated region
    $region14: #{tpu_custom_call.1} parent=1 // pred_check
      _
    $region15: #{tpu_custom_call.1} parent=1 // pred_check_branch
      %40 = sbr.rel (0) target = $region17
    $region16: #{tpu_custom_call.1} parent=1 // pred_region
      %s42 = ssub.s32 1024, 1024
      %43 = vsyncadd [#allocation6], %s42
      %s44 = sshll.u32 [#allocation7], 4
      %s45 = int_to_ptr.vmem [resolvable:$true] %s44
      %50 = dma.hbm_to_vmem [thread:$0]  %s3, 1024, %s45, [#allocation6], 64, 64, 4
    $region17: #{tpu_custom_call.1} parent=1 // pred_fallthru
      _
    // Predicated region
    $region18: #{tpu_custom_call.1} parent=1 // pred_check
      _
    $region19: #{tpu_custom_call.1} parent=1 // pred_check_branch
      %52 = sbr.rel (0) target = $region21
    $region20: #{tpu_custom_call.1} parent=1 // pred_region
      _
    $region21: #{tpu_custom_call.1} parent=1 // pred_fallthru
      _
    // Predicated region
    $region22: #{tpu_custom_call.1} parent=1 // pred_check
      _
    $region23: #{tpu_custom_call.1} parent=1 // pred_check_branch
      %54 = sbr.rel (0) target = $region25
    $region24: #{tpu_custom_call.1} parent=1 // pred_region
      %55 = dma.done [#allocation3], 128
    $region25: #{tpu_custom_call.1} parent=1 // pred_fallthru
      _
    // Predicated region
    $region26: #{tpu_custom_call.1} parent=1 // pred_check
      _
    $region27: #{tpu_custom_call.1} parent=1 // pred_check_branch
      %57 = sbr.rel (0) target = $region29
    $region28: #{tpu_custom_call.1} parent=1 // pred_region
      %58 = dma.done [#allocation6], 1024
    $region29: #{tpu_custom_call.1} parent=1 // pred_fallthru
      _
    // Predicated region
    $region30: #{tpu_custom_call.1} parent=1 // pred_check
      _
    $region31: #{tpu_custom_call.1} parent=1 // pred_check_branch
      %60 = sbr.rel (0) target = $region33
    $region32: #{tpu_custom_call.1} parent=1 // pred_region
      %61 = dma.done [#allocation6], 1024
    $region33: #{tpu_custom_call.1} parent=1 // pred_fallthru
      _
    %v63 = vld [vmem:[#allocation2] sm:$0xf]
    %v64 = vld [vmem:[#allocation2 + $0x4] sm:$0xf]
    %v65 = vld [vmem:[#allocation5] sm:$0xf]
    %v66 = vld [vmem:[#allocation5 + $0x4] sm:$0xf]
    %v67 = vld [vmem:[#allocation5 + $0x8] sm:$0xf]
    %v68 = vld [vmem:[#allocation5 + $0xc] sm:$0xf]
    %v69 = vld [vmem:[#allocation5 + $0x10] sm:$0xf]
    %v70 = vld [vmem:[#allocation5 + $0x14] sm:$0xf]
    %v71 = vld [vmem:[#allocation5 + $0x18] sm:$0xf]
    %v72 = vld [vmem:[#allocation5 + $0x1c] sm:$0xf]
    %v73 = vld [vmem:[#allocation5 + $0x20] sm:$0xf]
    %v74 = vld [vmem:[#allocation5 + $0x24] sm:$0xf]
    %v75 = vld [vmem:[#allocation5 + $0x28] sm:$0xf]
    %v76 = vld [vmem:[#allocation5 + $0x2c] sm:$0xf]
    %v77 = vld [vmem:[#allocation5 + $0x30] sm:$0xf]
    %v78 = vld [vmem:[#allocation5 + $0x34] sm:$0xf]
    %v79 = vld [vmem:[#allocation5 + $0x38] sm:$0xf]
    %v80 = vld [vmem:[#allocation5 + $0x3c] sm:$0xf]
    %v81 = vld [vmem:[%s2] sm:$0x1]
    %v83 = vlaneseq
    %v84 = vshrl.u32 %v83, 7
    %v85 = vsub.s32 0, %v84
    %v86 = vrot.slane %v81, %v85
    %v90 = vunpack.c.l.b16 %v63
    %v91 = vunpack.c.l.b16 %v64
    %v92 = vpack.c.b16 %v91, %v90
    %v110 = vunpack.c.l.b16 %v65
    %v111 = vunpack.c.l.b16 %v66
    %v112 = vunpack.c.l.b16 %v67
    %v113 = vunpack.c.l.b16 %v68
    %v114 = vunpack.c.l.b16 %v69
    %v115 = vunpack.c.l.b16 %v70
    %v116 = vunpack.c.l.b16 %v71
    %v117 = vunpack.c.l.b16 %v72
    %v118 = vunpack.c.l.b16 %v73
    %v119 = vunpack.c.l.b16 %v74
    %v120 = vunpack.c.l.b16 %v75
    %v121 = vunpack.c.l.b16 %v76
    %v122 = vunpack.c.l.b16 %v77
    %v123 = vunpack.c.l.b16 %v78
    %v124 = vunpack.c.l.b16 %v79
    %v125 = vunpack.c.l.b16 %v80
    %v126 = vpack.c.b16 %v111, %v110
    %v127 = vpack.c.b16 %v113, %v112
    %v128 = vpack.c.b16 %v115, %v114
    %v129 = vpack.c.b16 %v117, %v116
    %v130 = vpack.c.b16 %v119, %v118
    %v131 = vpack.c.b16 %v121, %v120
    %v132 = vpack.c.b16 %v123, %v122
    %v133 = vpack.c.b16 %v125, %v124
    %142 = vmatprep.subr.bf16.mxu0 0
    %143 = vmatpush1.bf16.msra.mxu0 %v126
    %144 = vmatprep.subr.bf16.mxu0 0
    %145 = vmatpush1.bf16.msra.mxu0 %v127
    %146 = vmatprep.subr.bf16.mxu0 0
    %147 = vmatpush1.bf16.msra.mxu0 %v128
    %148 = vmatprep.subr.bf16.mxu0 0
    %149 = vmatpush1.bf16.msra.mxu0 %v129
    %150 = vmatprep.subr.bf16.mxu0 0
    %151 = vmatpush1.bf16.msra.mxu0 %v130
    %152 = vmatprep.subr.bf16.mxu0 0
    %153 = vmatpush1.bf16.msra.mxu0 %v131
    %154 = vmatprep.subr.bf16.mxu0 0
    %155 = vmatpush1.bf16.msra.mxu0 %v132
    %156 = vmatprep.subr.bf16.mxu0 0
    %157 = vmatpush1.bf16.msra.mxu0 %v133
    %158 = vmatprep.subr.bf16.mxu0 0
    %159 = vmatpush1.bf16.msra.mxu0 0
    %160 = vmatprep.subr.bf16.mxu0 0
    %161 = vmatpush1.bf16.msra.mxu0 0
    %162 = vmatprep.subr.bf16.mxu0 0
    %163 = vmatpush1.bf16.msra.mxu0 0
    %164 = vmatprep.subr.bf16.mxu0 0
    %165 = vmatpush1.bf16.msra.mxu0 0
    %166 = vmatprep.subr.bf16.mxu0 0
    %167 = vmatpush1.bf16.msra.mxu0 0
    %168 = vmatprep.subr.bf16.mxu0 0
    %169 = vmatpush1.bf16.msra.mxu0 0
    %170 = vmatprep.subr.bf16.mxu0 0
    %171 = vmatpush1.bf16.msra.mxu0 0
    %172 = vmatprep.subr.bf16.mxu0 0
    %173 = vmatpush1.bf16.msra.mxu0 0
    %174 = vmatprep.mubr.bf16.mxu0 0
    %175 = vmatmul.mubr.bf16.gmra.mrb[0].mxu0 %v92
    %v176 = vpop.f32.mrb[0].mxu0
    %v177 = vadd.f32 %v86, %v176
    %v178 = vpop.f32.mrb[0].mxu0
    %v179 = vpop.f32.mrb[0].mxu0
    %v180 = vadd.f32 %v86, %v179
    %v181 = vpop.f32.mrb[0].mxu0
    %182 = vdwg.mxu0
    %v183 = vmax.f32 %v177, 0.0
    %v184 = vmax.f32 %v180, 0.0
    %v185 = vpack.c.bf16 %v184, %v183
    %v186 = vld [vmem:[#allocation7] sm:$0xf]
    %v187 = vld [vmem:[#allocation7 + $0x4] sm:$0xf]
    %v188 = vld [vmem:[#allocation7 + $0x8] sm:$0xf]
    %v189 = vld [vmem:[#allocation7 + $0xc] sm:$0xf]
    %v190 = vld [vmem:[#allocation7 + $0x10] sm:$0xf]
    %v191 = vld [vmem:[#allocation7 + $0x14] sm:$0xf]
    %v192 = vld [vmem:[#allocation7 + $0x18] sm:$0xf]
    %v193 = vld [vmem:[#allocation7 + $0x1c] sm:$0xf]
    %v194 = vld [vmem:[#allocation7 + $0x20] sm:$0xf]
    %v195 = vld [vmem:[#allocation7 + $0x24] sm:$0xf]
    %v196 = vld [vmem:[#allocation7 + $0x28] sm:$0xf]
    %v197 = vld [vmem:[#allocation7 + $0x2c] sm:$0xf]
    %v198 = vld [vmem:[#allocation7 + $0x30] sm:$0xf]
    %v199 = vld [vmem:[#allocation7 + $0x34] sm:$0xf]
    %v200 = vld [vmem:[#allocation7 + $0x38] sm:$0xf]
    %v201 = vld [vmem:[#allocation7 + $0x3c] sm:$0xf]
    %v202 = vld [vmem:[%s4] sm:$0x1]
    %v204 = vlaneseq
    %v205 = vshrl.u32 %v204, 7
    %v206 = vsub.s32 0, %v205
    %v207 = vrot.slane %v202, %v206
    %v225 = vunpack.c.l.b16 %v186
    %v226 = vunpack.c.l.b16 %v187
    %v227 = vunpack.c.l.b16 %v188
    %v228 = vunpack.c.l.b16 %v189
    %v229 = vunpack.c.l.b16 %v190
    %v230 = vunpack.c.l.b16 %v191
    %v231 = vunpack.c.l.b16 %v192
    %v232 = vunpack.c.l.b16 %v193
    %v233 = vunpack.c.l.b16 %v194
    %v234 = vunpack.c.l.b16 %v195
    %v235 = vunpack.c.l.b16 %v196
    %v236 = vunpack.c.l.b16 %v197
    %v237 = vunpack.c.l.b16 %v198
    %v238 = vunpack.c.l.b16 %v199
    %v239 = vunpack.c.l.b16 %v200
    %v240 = vunpack.c.l.b16 %v201
    %v241 = vpack.c.b16 %v226, %v225
    %v242 = vpack.c.b16 %v228, %v227
    %v243 = vpack.c.b16 %v230, %v229
    %v244 = vpack.c.b16 %v232, %v231
    %v245 = vpack.c.b16 %v234, %v233
    %v246 = vpack.c.b16 %v236, %v235
    %v247 = vpack.c.b16 %v238, %v237
    %v248 = vpack.c.b16 %v240, %v239
    %257 = vmatprep.subr.bf16.mxu0 0
    %258 = vmatpush1.bf16.msra.mxu0 %v241
    %259 = vmatprep.subr.bf16.mxu0 0
    %260 = vmatpush1.bf16.msra.mxu0 %v242
    %261 = vmatprep.subr.bf16.mxu0 0
    %262 = vmatpush1.bf16.msra.mxu0 %v243
    %263 = vmatprep.subr.bf16.mxu0 0
    %264 = vmatpush1.bf16.msra.mxu0 %v244
    %265 = vmatprep.subr.bf16.mxu0 0
    %266 = vmatpush1.bf16.msra.mxu0 %v245
    %267 = vmatprep.subr.bf16.mxu0 0
    %268 = vmatpush1.bf16.msra.mxu0 %v246
    %269 = vmatprep.subr.bf16.mxu0 0
    %270 = vmatpush1.bf16.msra.mxu0 %v247
    %271 = vmatprep.subr.bf16.mxu0 0
    %272 = vmatpush1.bf16.msra.mxu0 %v248
    %273 = vmatprep.subr.bf16.mxu0 0
    %274 = vmatpush1.bf16.msra.mxu0 0
    %275 = vmatprep.subr.bf16.mxu0 0
    %276 = vmatpush1.bf16.msra.mxu0 0
    %277 = vmatprep.subr.bf16.mxu0 0
    %278 = vmatpush1.bf16.msra.mxu0 0
    %279 = vmatprep.subr.bf16.mxu0 0
    %280 = vmatpush1.bf16.msra.mxu0 0
    %281 = vmatprep.subr.bf16.mxu0 0
    %282 = vmatpush1.bf16.msra.mxu0 0
    %283 = vmatprep.subr.bf16.mxu0 0
    %284 = vmatpush1.bf16.msra.mxu0 0
    %285 = vmatprep.subr.bf16.mxu0 0
    %286 = vmatpush1.bf16.msra.mxu0 0
    %287 = vmatprep.subr.bf16.mxu0 0
    %288 = vmatpush1.bf16.msra.mxu0 0
    %289 = vmatprep.mubr.bf16.mxu0 0
    %290 = vmatmul.mubr.bf16.gmra.mrb[0].mxu0 %v185
    %v291 = vpop.f32.mrb[0].mxu0
    %v292 = vadd.f32 %v207, %v291
    %v293 = vpop.f32.mrb[0].mxu0
    %v294 = vpop.f32.mrb[0].mxu0
    %v295 = vadd.f32 %v207, %v294
    %v296 = vpop.f32.mrb[0].mxu0
    %297 = vdwg.mxu0
    %v298 = vmax.f32 %v292, 0.0
    %v299 = vmax.f32 %v295, 0.0
    %v300 = vlaneseq
    %v301 = vand.u32 %v300, 127
    %vm302 = vcmp.lt.s32.totalorder %v301, 16
    %v303 = vsel %vm302, %v298, -inf
    %v304 = vsel %vm302, %v299, -inf
    %305 = vmax.xlane.f32.xlu0 %v303
    %v306 = vpop.xlane.xlu0 %305
    %307 = vmax.xlane.f32.xlu0 %v304
    %v308 = vpop.xlane.xlu0 %307
    %v309 = vsub.f32 %v303, %v306
    %v310 = vsub.f32 %v304, %v308
    %v311 = vmul.f32 %v309, 1.442695
    %v312 = vpow.pop %v311
    %v313 = vmul.f32 %v310, 1.442695
    %v314 = vpow.pop %v313
    %315 = vadd.xlane.f32.xlu0 %v312
    %v316 = vpop.xlane.xlu0 %315
    %317 = vadd.xlane.f32.xlu0 %v314
    %v318 = vpop.xlane.xlu0 %317
    %v319 = vrcp.pop %v316
    %v320 = vrcp.pop %v318
    %v321 = vmul.f32 %v312, %v319
    %v322 = vmul.f32 %v314, %v320
    %v323 = vpack.c.bf16 %v322, %v321
    %v325 = vunpack.c.l.b16 %v323
    %v326 = vunpack.c.h.b16 %v323
    %v327 = vpack.c.b16 %v325, %v325
    %v328 = vpack.c.b16 %v326, %v326
    %331 = vst [vmem:[#allocation8] sm:$0xf] %v327
    %332 = vst [vmem:[#allocation8 + $0x4] sm:$0xf] %v328
    // Predicated region
    $region34: #{tpu_custom_call.1} parent=1 // pred_check
      _
    $region35: #{tpu_custom_call.1} parent=1 // pred_check_branch
      %334 = sbr.rel (0) target = $region37
    $region36: #{tpu_custom_call.1} parent=1 // pred_region
      %s336 = ssub.s32 128, 128
      %337 = vsyncadd [#allocation4], %s336
      %s338 = sshll.u32 [#allocation8], 4
      %s339 = int_to_ptr.vmem [resolvable:$true] %s338
      %344 = dma.vmem_to_hbm [thread:$0]  %s339, 128, %s5, [#allocation4], 64, 64, 4
    $region37: #{tpu_custom_call.1} parent=1 // pred_fallthru
      _
    // Predicated region
    $region38: #{tpu_custom_call.1} parent=1 // pred_check
      _
    $region39: #{tpu_custom_call.1} parent=1 // pred_check_branch
      %346 = sbr.rel (0) target = $region41
    $region40: #{tpu_custom_call.1} parent=1 // pred_region
      %347 = dma.done [#allocation4], 128
    $region41: #{tpu_custom_call.1} parent=1 // pred_fallthru
      _
    %348 = vsyncpa [#allocation3], 1
    %349 = vsyncpa [#allocation6], 1
    %350 = vsyncpa [#allocation4], 1

// kernel: tpu_custom_call.1
$region0: #{tpu_custom_call.1}
  #allocation0 [shape = 'u32[]', space=smem, size = 0x4, offset = 0x4, fixed_abs, tag = 'smem constant byte address 0x4 - core index']
  #allocation1 [shape = 'u32[144,128]{1,0:T(1,128)}', space=vmem, size = 0x12000, scoped, tag = 'internal scratch']
  %s0 = inlined_call_operand.hbm [shape: bf16[16,128], index: 0, kind: input, shape index: {}]
  %s1 = inlined_call_operand.hbm [shape: bf16[128,128], index: 1, kind: input, shape index: {}]
  %s2 = inlined_call_operand.vmem [shape: f32[1,128], index: 2, kind: input, shape index: {}]
  %s3 = inlined_call_operand.hbm [shape: bf16[128,128], index: 3, kind: input, shape index: {}]
  %s4 = inlined_call_operand.vmem [shape: f32[1,128], index: 4, kind: input, shape index: {}]
  %s5 = inlined_call_operand.hbm [shape: bf16[16,128], index: 5, kind: output, shape index: {}]
  %s6 = sld [smem:[#allocation0]]
  $region42: #{tpu_custom_call.1} parent=0
    _
  %s8 = ssub.s32 1, %s6
  %s9 = scalar_select 0, %s8, %s6
  $region1: #{tpu_custom_call.1} parent=0
    #allocation2 [shape = 'u8[4096]{0}', space=vmem, size = 0x1000, scoped, tag = 'input window, operand 0, single buffered']
    #allocation3 [shape = 's32[1]{0}', space=sflag, size = 0x4, scoped, tag = 'scoped memory for tpu_custom_call.1']
    #allocation4 [shape = 's32[1]{0}', space=sflag, size = 0x4, scoped, tag = 'scoped memory for tpu_custom_call.1']
    #allocation5 [shape = 'u8[32768]{0}', space=vmem, size = 0x8000, scoped, tag = 'input window, operand 1, single buffered']
    #allocation6 [shape = 's32[1]{0}', space=sflag, size = 0x4, scoped, tag = 'scoped memory for tpu_custom_call.1']
    #allocation7 [shape = 'u8[32768]{0}', space=vmem, size = 0x8000, scoped, tag = 'input window, operand 3, single buffered']
    #allocation8 [shape = 'u8[4096]{0}', space=vmem, size = 0x1000, scoped, tag = 'output window, operand 0, single buffered']
    %10 = vsyncpa [#allocation3], 0
    %11 = vsyncpa [#allocation6], 0
    %12 = vsyncpa [#allocation4], 0
    // Predicated region
    $region2: #{tpu_custom_call.1} parent=1 // pred_check
      _
    $region3: #{tpu_custom_call.1} parent=1 // pred_check_branch
      %14 = sbr.rel (0) target = $region5
    $region4: #{tpu_custom_call.1} parent=1 // pred_region
      %s16 = ssub.s32 128, 128
      %17 = vsyncadd [#allocation3], %s16
      %s18 = sshll.u32 [#allocation2], 4
      %s19 = int_to_ptr.vmem [resolvable:$true] %s18
      %24 = dma.hbm_to_vmem [thread:$0]  %s0, 128, %s19, [#allocation3], 64, 64, 4
    $region5: #{tpu_custom_call.1} parent=1 // pred_fallthru
      _
    // Predicated region
    $region6: #{tpu_custom_call.1} parent=1 // pred_check
      _
    $region7: #{tpu_custom_call.1} parent=1 // pred_check_branch
      %26 = sbr.rel (0) target = $region9
    $region8: #{tpu_custom_call.1} parent=1 // pred_region
      %s28 = ssub.s32 1024, 1024
      %29 = vsyncadd [#allocation6], %s28
      %s30 = sshll.u32 [#allocation5], 4
      %s31 = int_to_ptr.vmem [resolvable:$true] %s30
      %36 = dma.hbm_to_vmem [thread:$0]  %s1, 1024, %s31, [#allocation6], 64, 64, 4
    $region9: #{tpu_custom_call.1} parent=1 // pred_fallthru
      _
    // Predicated region
    $region10: #{tpu_custom_call.1} parent=1 // pred_check
      _
    $region11: #{tpu_custom_call.1} parent=1 // pred_check_branch
      %38 = sbr.rel (0) target = $region13
    $region12: #{tpu_custom_call.1} parent=1 // pred_region
      _
    $region13: #{tpu_custom_call.1} parent=1 // pred_fallthru
      _
    // Predicated region
    $region14: #{tpu_custom_call.1} parent=1 // pred_check
      _
    $region15: #{tpu_custom_call.1} parent=1 // pred_check_branch
      %40 = sbr.rel (0) target = $region17
    $region16: #{tpu_custom_call.1} parent=1 // pred_region
      %s42 = ssub.s32 1024, 1024
      %43 = vsyncadd [#allocation6], %s42
      %s44 = sshll.u32 [#allocation7], 4
      %s45 = int_to_ptr.vmem [resolvable:$true] %s44
      %50 = dma.hbm_to_vmem [thread:$0]  %s3, 1024, %s45, [#allocation6], 64, 64, 4
    $region17: #{tpu_custom_call.1} parent=1 // pred_fallthru
      _
    // Predicated region
    $region18: #{tpu_custom_call.1} parent=1 // pred_check
      _
    $region19: #{tpu_custom_call.1} parent=1 // pred_check_branch
      %52 = sbr.rel (0) target = $region21
    $region20: #{tpu_custom_call.1} parent=1 // pred_region
      _
    $region21: #{tpu_custom_call.1} parent=1 // pred_fallthru
      _
    // Predicated region
    $region22: #{tpu_custom_call.1} parent=1 // pred_check
      _
    $region23: #{tpu_custom_call.1} parent=1 // pred_check_branch
      %54 = sbr.rel (0) target = $region25
    $region24: #{tpu_custom_call.1} parent=1 // pred_region
      %55 = dma.done [#allocation3], 128
    $region25: #{tpu_custom_call.1} parent=1 // pred_fallthru
      _
    // Predicated region
    $region26: #{tpu_custom_call.1} parent=1 // pred_check
      _
    $region27: #{tpu_custom_call.1} parent=1 // pred_check_branch
      %57 = sbr.rel (0) target = $region29
    $region28: #{tpu_custom_call.1} parent=1 // pred_region
      %58 = dma.done [#allocation6], 1024
    $region29: #{tpu_custom_call.1} parent=1 // pred_fallthru
      _
    // Predicated region
    $region30: #{tpu_custom_call.1} parent=1 // pred_check
      _
    $region31: #{tpu_custom_call.1} parent=1 // pred_check_branch
      %60 = sbr.rel (0) target = $region33
    $region32: #{tpu_custom_call.1} parent=1 // pred_region
      %61 = dma.done [#allocation6], 1024
    $region33: #{tpu_custom_call.1} parent=1 // pred_fallthru
      _
    %v63 = vld [vmem:[#allocation2] sm:$0xf]
    %v64 = vld [vmem:[#allocation2 + $0x4] sm:$0xf]
    %v65 = vld [vmem:[#allocation5] sm:$0xf]
    %v66 = vld [vmem:[#allocation5 + $0x4] sm:$0xf]
    %v67 = vld [vmem:[#allocation5 + $0x8] sm:$0xf]
    %v68 = vld [vmem:[#allocation5 + $0xc] sm:$0xf]
    %v69 = vld [vmem:[#allocation5 + $0x10] sm:$0xf]
    %v70 = vld [vmem:[#allocation5 + $0x14] sm:$0xf]
    %v71 = vld [vmem:[#allocation5 + $0x18] sm:$0xf]
    %v72 = vld [vmem:[#allocation5 + $0x1c] sm:$0xf]
    %v73 = vld [vmem:[#allocation5 + $0x20] sm:$0xf]
    %v74 = vld [vmem:[#allocation5 + $0x24] sm:$0xf]
    %v75 = vld [vmem:[#allocation5 + $0x28] sm:$0xf]
    %v76 = vld [vmem:[#allocation5 + $0x2c] sm:$0xf]
    %v77 = vld [vmem:[#allocation5 + $0x30] sm:$0xf]
    %v78 = vld [vmem:[#allocation5 + $0x34] sm:$0xf]
    %v79 = vld [vmem:[#allocation5 + $0x38] sm:$0xf]
    %v80 = vld [vmem:[#allocation5 + $0x3c] sm:$0xf]
    %v81 = vld [vmem:[%s2] sm:$0x1]
    %v83 = vlaneseq
    %v84 = vshrl.u32 %v83, 7
    %v85 = vsub.s32 0, %v84
    %v86 = vrot.slane %v81, %v85
    %v90 = vunpack.c.l.b16 %v63
    %v91 = vunpack.c.l.b16 %v64
    %v92 = vpack.c.b16 %v91, %v90
    %v110 = vunpack.c.l.b16 %v65
    %v111 = vunpack.c.l.b16 %v66
    %v112 = vunpack.c.l.b16 %v67
    %v113 = vunpack.c.l.b16 %v68
    %v114 = vunpack.c.l.b16 %v69
    %v115 = vunpack.c.l.b16 %v70
    %v116 = vunpack.c.l.b16 %v71
    %v117 = vunpack.c.l.b16 %v72
    %v118 = vunpack.c.l.b16 %v73
    %v119 = vunpack.c.l.b16 %v74
    %v120 = vunpack.c.l.b16 %v75
    %v121 = vunpack.c.l.b16 %v76
    %v122 = vunpack.c.l.b16 %v77
    %v123 = vunpack.c.l.b16 %v78
    %v124 = vunpack.c.l.b16 %v79
    %v125 = vunpack.c.l.b16 %v80
    %v126 = vpack.c.b16 %v111, %v110
    %v127 = vpack.c.b16 %v113, %v112
    %v128 = vpack.c.b16 %v115, %v114
    %v129 = vpack.c.b16 %v117, %v116
    %v130 = vpack.c.b16 %v119, %v118
    %v131 = vpack.c.b16 %v121, %v120
    %v132 = vpack.c.b16 %v123, %v122
    %v133 = vpack.c.b16 %v125, %v124
    %142 = vmatprep.subr.bf16.mxu0 0
    %143 = vmatpush1.bf16.msra.mxu0 %v126
    %144 = vmatprep.subr.bf16.mxu0 0
    %145 = vmatpush1.bf16.msra.mxu0 %v127
    %146 = vmatprep.subr.bf16.mxu0 0
    %147 = vmatpush1.bf16.msra.mxu0 %v128
    %148 = vmatprep.subr.bf16.mxu0 0
    %149 = vmatpush1.bf16.msra.mxu0 %v129
    %150 = vmatprep.subr.bf16.mxu0 0
    %151 = vmatpush1.bf16.msra.mxu0 %v130
    %152 = vmatprep.subr.bf16.mxu0 0
    %153 = vmatpush1.bf16.msra.mxu0 %v131
    %154 = vmatprep.subr.bf16.mxu0 0
    %155 = vmatpush1.bf16.msra.mxu0 %v132
    %156 = vmatprep.subr.bf16.mxu0 0
    %157 = vmatpush1.bf16.msra.mxu0 %v133
    %158 = vmatprep.subr.bf16.mxu0 0
    %159 = vmatpush1.bf16.msra.mxu0 0
    %160 = vmatprep.subr.bf16.mxu0 0
    %161 = vmatpush1.bf16.msra.mxu0 0
    %162 = vmatprep.subr.bf16.mxu0 0
    %163 = vmatpush1.bf16.msra.mxu0 0
    %164 = vmatprep.subr.bf16.mxu0 0
    %165 = vmatpush1.bf16.msra.mxu0 0
    %166 = vmatprep.subr.bf16.mxu0 0
    %167 = vmatpush1.bf16.msra.mxu0 0
    %168 = vmatprep.subr.bf16.mxu0 0
    %169 = vmatpush1.bf16.msra.mxu0 0
    %170 = vmatprep.subr.bf16.mxu0 0
    %171 = vmatpush1.bf16.msra.mxu0 0
    %172 = vmatprep.subr.bf16.mxu0 0
    %173 = vmatpush1.bf16.msra.mxu0 0
    %174 = vmatprep.mubr.bf16.mxu0 0
    %175 = vmatmul.mubr.bf16.gmra.mrb[0].mxu0 %v92
    %v176 = vpop.f32.mrb[0].mxu0
    %v177 = vadd.f32 %v86, %v176
    %v178 = vpop.f32.mrb[0].mxu0
    %v179 = vpop.f32.mrb[0].mxu0
    %v180 = vadd.f32 %v86, %v179
    %v181 = vpop.f32.mrb[0].mxu0
    %182 = vdwg.mxu0
    %v183 = vmax.f32 %v177, 0.0
    %v184 = vmax.f32 %v180, 0.0
    %v185 = vpack.c.bf16 %v184, %v183
    %v186 = vld [vmem:[#allocation7] sm:$0xf]
    %v187 = vld [vmem:[#allocation7 + $0x4] sm:$0xf]
    %v188 = vld [vmem:[#allocation7 + $0x8] sm:$0xf]
    %v189 = vld [vmem:[#allocation7 + $0xc] sm:$0xf]
    %v190 = vld [vmem:[#allocation7 + $0x10] sm:$0xf]
    %v191 = vld [vmem:[#allocation7 + $0x14] sm:$0xf]
    %v192 = vld [vmem:[#allocation7 + $0x18] sm:$0xf]
    %v193 = vld [vmem:[#allocation7 + $0x1c] sm:$0xf]
    %v194 = vld [vmem:[#allocation7 + $0x20] sm:$0xf]
    %v195 = vld [vmem:[#allocation7 + $0x24] sm:$0xf]
    %v196 = vld [vmem:[#allocation7 + $0x28] sm:$0xf]
    %v197 = vld [vmem:[#allocation7 + $0x2c] sm:$0xf]
    %v198 = vld [vmem:[#allocation7 + $0x30] sm:$0xf]
    %v199 = vld [vmem:[#allocation7 + $0x34] sm:$0xf]
    %v200 = vld [vmem:[#allocation7 + $0x38] sm:$0xf]
    %v201 = vld [vmem:[#allocation7 + $0x3c] sm:$0xf]
    %v202 = vld [vmem:[%s4] sm:$0x1]
    %v204 = vlaneseq
    %v205 = vshrl.u32 %v204, 7
    %v206 = vsub.s32 0, %v205
    %v207 = vrot.slane %v202, %v206
    %v225 = vunpack.c.l.b16 %v186
    %v226 = vunpack.c.l.b16 %v187
    %v227 = vunpack.c.l.b16 %v188
    %v228 = vunpack.c.l.b16 %v189
    %v229 = vunpack.c.l.b16 %v190
    %v230 = vunpack.c.l.b16 %v191
    %v231 = vunpack.c.l.b16 %v192
    %v232 = vunpack.c.l.b16 %v193
    %v233 = vunpack.c.l.b16 %v194
    %v234 = vunpack.c.l.b16 %v195
    %v235 = vunpack.c.l.b16 %v196
    %v236 = vunpack.c.l.b16 %v197
    %v237 = vunpack.c.l.b16 %v198
    %v238 = vunpack.c.l.b16 %v199
    %v239 = vunpack.c.l.b16 %v200
    %v240 = vunpack.c.l.b16 %v201
    %v241 = vpack.c.b16 %v226, %v225
    %v242 = vpack.c.b16 %v228, %v227
    %v243 = vpack.c.b16 %v230, %v229
    %v244 = vpack.c.b16 %v232, %v231
    %v245 = vpack.c.b16 %v234, %v233
    %v246 = vpack.c.b16 %v236, %v235
    %v247 = vpack.c.b16 %v238, %v237
    %v248 = vpack.c.b16 %v240, %v239
    %257 = vmatprep.subr.bf16.mxu0 0
    %258 = vmatpush1.bf16.msra.mxu0 %v241
    %259 = vmatprep.subr.bf16.mxu0 0
    %260 = vmatpush1.bf16.msra.mxu0 %v242
    %261 = vmatprep.subr.bf16.mxu0 0
    %262 = vmatpush1.bf16.msra.mxu0 %v243
    %263 = vmatprep.subr.bf16.mxu0 0
    %264 = vmatpush1.bf16.msra.mxu0 %v244
    %265 = vmatprep.subr.bf16.mxu0 0
    %266 = vmatpush1.bf16.msra.mxu0 %v245
    %267 = vmatprep.subr.bf16.mxu0 0
    %268 = vmatpush1.bf16.msra.mxu0 %v246
    %269 = vmatprep.subr.bf16.mxu0 0
    %270 = vmatpush1.bf16.msra.mxu0 %v247
    %271 = vmatprep.subr.bf16.mxu0 0
    %272 = vmatpush1.bf16.msra.mxu0 %v248
    %273 = vmatprep.subr.bf16.mxu0 0
    %274 = vmatpush1.bf16.msra.mxu0 0
    %275 = vmatprep.subr.bf16.mxu0 0
    %276 = vmatpush1.bf16.msra.mxu0 0
    %277 = vmatprep.subr.bf16.mxu0 0
    %278 = vmatpush1.bf16.msra.mxu0 0
    %279 = vmatprep.subr.bf16.mxu0 0
    %280 = vmatpush1.bf16.msra.mxu0 0
    %281 = vmatprep.subr.bf16.mxu0 0
    %282 = vmatpush1.bf16.msra.mxu0 0
    %283 = vmatprep.subr.bf16.mxu0 0
    %284 = vmatpush1.bf16.msra.mxu0 0
    %285 = vmatprep.subr.bf16.mxu0 0
    %286 = vmatpush1.bf16.msra.mxu0 0
    %287 = vmatprep.subr.bf16.mxu0 0
    %288 = vmatpush1.bf16.msra.mxu0 0
    %289 = vmatprep.mubr.bf16.mxu0 0
    %290 = vmatmul.mubr.bf16.gmra.mrb[0].mxu0 %v185
    %v291 = vpop.f32.mrb[0].mxu0
    %v292 = vadd.f32 %v207, %v291
    %v293 = vpop.f32.mrb[0].mxu0
    %v294 = vpop.f32.mrb[0].mxu0
    %v295 = vadd.f32 %v207, %v294
    %v296 = vpop.f32.mrb[0].mxu0
    %297 = vdwg.mxu0
    %v298 = vmax.f32 %v292, 0.0
    %v299 = vmax.f32 %v295, 0.0
    %v300 = vlaneseq
    %v301 = vand.u32 %v300, 127
    %vm302 = vcmp.lt.s32.totalorder %v301, 16
    %v303 = vsel %vm302, %v298, -inf
    %v304 = vsel %vm302, %v299, -inf
    %305 = vmax.xlane.f32.xlu0 %v303
    %v306 = vpop.xlane.xlu0 %305
    %307 = vmax.xlane.f32.xlu0 %v304
    %v308 = vpop.xlane.xlu0 %307
    %v309 = vsub.f32 %v303, %v306
    %v310 = vsub.f32 %v304, %v308
    %v311 = vmul.f32 %v309, 1.442695
    %v312 = vpow.pop %v311
    %v313 = vmul.f32 %v310, 1.442695
    %v314 = vpow.pop %v313
    %315 = vadd.xlane.f32.xlu0 %v312
    %v316 = vpop.xlane.xlu0 %315
    %317 = vadd.xlane.f32.xlu0 %v314
    %v318 = vpop.xlane.xlu0 %317
    %v319 = vrcp.pop %v316
    %v320 = vrcp.pop %v318
    %v321 = vmul.f32 %v312, %v319
    %v322 = vmul.f32 %v314, %v320
    %v323 = vpack.c.bf16 %v322, %v321
    %v325 = vunpack.c.l.b16 %v323
    %v326 = vunpack.c.h.b16 %v323
    %v327 = vpack.c.b16 %v325, %v325
    %v328 = vpack.c.b16 %v326, %v326
    %331 = vst [vmem:[#allocation8] sm:$0xf] %v327
    %332 = vst [vmem:[#allocation8 + $0x4] sm:$0xf] %v328
    // Predicated region
    $region34: #{tpu_custom_call.1} parent=1 // pred_check
      _
    $region35: #{tpu_custom_call.1} parent=1 // pred_check_branch
      %334 = sbr.rel (0) target = $region37
    $region36: #{tpu_custom_call.1} parent=1 // pred_region
      %s336 = ssub.s32 128, 128
      %337 = vsyncadd [#allocation4], %s336
      %s338 = sshll.u32 [#allocation8], 4
      %s339 = int_to_ptr.vmem [resolvable:$true] %s338
      %344 = dma.vmem_to_hbm [thread:$0]  %s339, 128, %s5, [#allocation4], 64, 64, 4
    $region37: #{tpu_custom_call.1} parent=1 // pred_fallthru
      _
    // Predicated region
    $region38: #{tpu_custom_call.1} parent=1 // pred_check
      _
    $region39: #{tpu_custom_call.1} parent=1 // pred_check_branch
      %346 = sbr.rel (0) target = $region41
    $region40: #{tpu_custom_call.1} parent=1 // pred_region
      %347 = dma.done [#allocation4], 128
    $region41: #{tpu_custom_call.1} parent=1 // pred_fallthru
      _
    %348 = vsyncpa [#allocation3], 1
    %349 = vsyncpa [#allocation6], 1
    %350 = vsyncpa [#allocation4], 1

</llo_original>
